<compile_context>
chip_gen: v7x
topology: tpu7x:2x2x1
jax: 0.10.0
libtpu: 0.0.40
codegen_flags: <defaults>
</compile_context>

<pallas_src>
import math

import jax
import jax.numpy as jnp
from jax.experimental import pallas as pl
from jax.experimental.pallas import tpu as pltpu


def _td_kernel(p_ref, s_ref, x_ref, o_ref):
    """o = p * s + x on one lane-dense [block_rows, lane] tile (native dtype)."""
    p = p_ref[0]  # f32 scalar from SMEM
    s = s_ref[...].astype(jnp.float32)
    x = x_ref[...].astype(jnp.float32)
    o_ref[...] = (p * s + x).astype(o_ref.dtype)


def _cdiv(a, b):
    return -(-a // b)


def _choose_lane(total, sub):
    """Widest lane width (multiple of 128) dividing `total`; prefer rows % sub == 0."""
    for cand in (1024, 512, 256, 128):
        if total % cand == 0 and (total // cand) % sub == 0:
            return cand
    for cand in (1024, 512, 256, 128):
        if total % cand == 0:
            return cand
    return None  # ragged: caller falls back to plain JAX


def _choose_block_rows(rows, lane, itemsize, sub):
    """Row tile: multiple of the dtype sublane packing, <= ~4 MiB per buffer,
    and >= 2 blocks whenever rows allow it (feeds both v7x TensorCores)."""
    if rows <= sub:
        return rows  # block shape == full array shape (allowed)
    cap_rows = max(sub, ((4 << 20) // (lane * itemsize)) // sub * sub)
    half_rows = _cdiv(_cdiv(rows, 2), sub) * sub  # exactly 2 blocks if cap allows
    return max(sub, min(cap_rows, half_rows))


def time_decay_cell_forward(input_dyn, internal_state, internal_memory,
                            temporal_parameter, *, force_pallas=False):
    """Same semantics as time_decay_cell.forward.

    input_dyn, internal_state: arrays of identical shape (e.g. NCHW).
    internal_memory: unused by the module (kept for signature parity).
    temporal_parameter: single-element parameter (shape (1,) or scalar).
    Returns (new_state, None); new_state has input_dyn's dtype.
    """
    del internal_memory  # not used by the module's forward pass

    # The flatten-to-(rows, lane) layout requires a *scalar* parameter.
    assert math.prod(jnp.shape(temporal_parameter)) == 1, (
        "time_decay_cell uses a single scalar temporal_parameter")

    orig_shape = input_dyn.shape
    dtype = input_dyn.dtype
    itemsize = jnp.dtype(dtype).itemsize
    total = math.prod(orig_shape)

    p_scalar = jnp.asarray(temporal_parameter, jnp.float32).reshape(())

    sub = max(8, 8 * (4 // max(itemsize, 1)))  # 8 f32 / 16 bf16 / 32 int8
    lane = _choose_lane(total, sub)

    # Fast path: tiny tensors (fixed kernel overhead dominates) or ragged sizes
    # (avoids pad + slice extra HBM passes). XLA fuses a scalar axpy at roofline.
    small = total * itemsize < (1 << 20)
    if lane is None or (small and not force_pallas):
        new_state = (p_scalar * internal_state.astype(jnp.float32)
                     + input_dyn.astype(jnp.float32)).astype(dtype)
        return new_state, None

    rows = total // lane
    block_rows = _choose_block_rows(rows, lane, itemsize, sub)
    grid = (_cdiv(rows, block_rows),)  # partial last block is masked by Pallas

    # Free reshapes (contiguous) — no dtype cast, no padding, no extra HBM pass.
    x2 = input_dyn.reshape(rows, lane)
    s2 = internal_state.reshape(rows, lane)
    p = p_scalar.reshape(1)

    block_bytes = block_rows * lane * itemsize
    # 3 arrays x double-buffer + 4 MiB headroom; never below the 16 MiB default,
    # never above ~28 MiB (safe under v7x's 64 MiB physical VMEM).
    vmem_limit = max(16 << 20, 6 * block_bytes + (4 << 20))

    tile = pl.BlockSpec((block_rows, lane), lambda i: (i, 0))

    out = pl.pallas_call(
        _td_kernel,
        out_shape=jax.ShapeDtypeStruct((rows, lane), dtype),
        grid=grid,
        in_specs=[
            pl.BlockSpec(memory_space=pltpu.MemorySpace.SMEM),  # scalar param
            tile,   # internal_state slab
            tile,   # input_dyn slab
        ],
        out_specs=tile,
        compiler_params=pltpu.CompilerParams(
            dimension_semantics=("parallel",),
            vmem_limit_bytes=int(vmem_limit)),
        cost_estimate=pl.CostEstimate(
            flops=2 * total, transcendentals=0,
            bytes_accessed=3 * total * itemsize),
    )(p, s2, x2)

    new_state = out.reshape(orig_shape)
    # Module returns new_memory = None (nothing to compute).
    return new_state, None


# ----------------------- pure-JAX reference (for checking) -----------------------
def time_decay_cell_reference(input_dyn, internal_state, internal_memory,
                              temporal_parameter):
    del internal_memory
    p = jnp.asarray(temporal_parameter, jnp.float32).reshape(())
    new_state = (p * internal_state.astype(jnp.float32)
                 + input_dyn.astype(jnp.float32)).astype(input_dyn.dtype)
    return new_state, None


if __name__ == "__main__":
    key = jax.random.PRNGKey(0)
    N, Ci, Cm, H, W = 2, 4, 8, 16, 16
    k0, k1, k2 = jax.random.split(key, 3)

    input_dyn = jax.random.normal(k0, (N, Ci, H, W), jnp.float32)
    internal_state = jax.random.normal(k1, (N, Ci, H, W), jnp.float32)
    internal_memory = jax.random.normal(k2, (N, Cm, H, W), jnp.float32)

    # Module initializes temporal_parameter to 0.0; use a nonzero value too so
    # the multiply path is exercised.
    for p_val in (0.37, 0.0):
        temporal_parameter = jnp.array([p_val], jnp.float32)

        # Pallas kernel path (force past the small-size fast path for the demo).
        new_state, new_memory = time_decay_cell_forward(
            input_dyn, internal_state, internal_memory, temporal_parameter,
            force_pallas=True)
        jax.block_until_ready(new_state)

        ref_state, ref_memory = time_decay_cell_reference(
            input_dyn, internal_state, internal_memory, temporal_parameter)

        assert new_memory is None and ref_memory is None
        assert new_state.shape == (N, Ci, H, W)
        assert new_state.dtype == input_dyn.dtype
        assert jnp.allclose(new_state, ref_state, atol=1e-6, rtol=1e-6)

        # Auto path (small tensor -> fused plain-JAX fast path) must agree too.
        auto_state, _ = time_decay_cell_forward(
            input_dyn, internal_state, internal_memory, temporal_parameter)
        assert jnp.allclose(auto_state, ref_state, atol=1e-6, rtol=1e-6)

    # Native-dtype (bf16) streaming path: no wrapper upcast, bf16 in / bf16 out.
    x_bf = input_dyn.astype(jnp.bfloat16)
    s_bf = internal_state.astype(jnp.bfloat16)
    temporal_parameter = jnp.array([0.37], jnp.float32)
    bf_state, bf_mem = time_decay_cell_forward(
        x_bf, s_bf, internal_memory, temporal_parameter, force_pallas=True)
    jax.block_until_ready(bf_state)
    bf_ref, _ = time_decay_cell_reference(x_bf, s_bf, internal_memory,
                                          temporal_parameter)
    assert bf_mem is None
    assert bf_state.dtype == jnp.bfloat16
    assert jnp.allclose(bf_state.astype(jnp.float32), bf_ref.astype(jnp.float32),
                        atol=1e-2, rtol=1e-2)

    print("KERNEL_OK")
</pallas_src>

<mosaic_0001>
module attributes {stable_mosaic.version = 11 : i64} {
  func.func @_td_kernel(%arg0: i32, %arg1: memref<1xf32, #tpu.memory_space<smem>>, %arg2: memref<8x256xf32, #tpu.memory_space<vmem>>, %arg3: memref<8x256xf32, #tpu.memory_space<vmem>>, %arg4: memref<8x256xf32, #tpu.memory_space<vmem>>) attributes {dimension_semantics = [#tpu.dimension_semantics<parallel>], iteration_bounds = array<i64: 1>, scalar_prefetch = 0 : i64, scratch_operands = 0 : i64, tpu.core_type = #tpu.core_type<tc>, window_params = [{transform_indices = @transform_0, window_bounds = array<i64: 1>}, {transform_indices = @transform_1, window_bounds = array<i64: 8, 256>}, {transform_indices = @transform_2, window_bounds = array<i64: 8, 256>}, {transform_indices = @transform_3, window_bounds = array<i64: 8, 256>}]} {
    %c0 = arith.constant 0 : index
    %0 = memref.load %arg1[%c0] : memref<1xf32, #tpu.memory_space<smem>>
    %c0_0 = arith.constant 0 : index
    %c0_1 = arith.constant 0 : index
    %1 = vector.load %arg2[%c0_0, %c0_1] : memref<8x256xf32, #tpu.memory_space<vmem>>, vector<8x256xf32>
    %c0_2 = arith.constant 0 : index
    %c0_3 = arith.constant 0 : index
    %2 = vector.load %arg3[%c0_2, %c0_3] : memref<8x256xf32, #tpu.memory_space<vmem>>, vector<8x256xf32>
    %3 = vector.broadcast %0 : f32 to vector<8x256xf32>
    %4 = arith.mulf %3, %1 : vector<8x256xf32>
    %5 = arith.addf %4, %2 : vector<8x256xf32>
    %c0_4 = arith.constant 0 : index
    %c0_5 = arith.constant 0 : index
    %6 = vector.load %arg4[%c0_4, %c0_5] : memref<8x256xf32, #tpu.memory_space<vmem>>, vector<8x256xf32>
    tpu.vector_store %arg4[%c0_4, %c0_5], %5 {strides = array<i32>} : memref<8x256xf32, #tpu.memory_space<vmem>>, vector<8x256xf32>,
    return
  }
  func.func @transform_0(%arg0: i32) -> i32 {
    %c0_i32 = arith.constant 0 : i32
    %c0_i32_0 = arith.constant 0 : i32
    return %c0_i32 : i32
  }
  func.func @transform_1(%arg0: i32) -> (i32, i32) {
    %c0_i32 = arith.constant 0 : i32
    %c0_i32_0 = arith.constant 0 : i32
    return %arg0, %c0_i32 : i32, i32
  }
  func.func @transform_2(%arg0: i32) -> (i32, i32) {
    %c0_i32 = arith.constant 0 : i32
    %c0_i32_0 = arith.constant 0 : i32
    return %arg0, %c0_i32 : i32, i32
  }
  func.func @transform_3(%arg0: i32) -> (i32, i32) {
    %c0_i32 = arith.constant 0 : i32
    %c0_i32_0 = arith.constant 0 : i32
    return %arg0, %c0_i32 : i32, i32
  }
}

</mosaic_0001>

<llo_original>
// kernel: tpu_custom_call.1
$region0: #{tpu_custom_call.1}
  #allocation0 [shape = 'u32[]', space=smem, size = 0x4, offset = 0x4, fixed_abs, tag = 'smem constant byte address 0x4 - core index']
  #allocation1 [shape = 'u32[144,128]{1,0:T(1,128)}', space=vmem, size = 0x12000, scoped, tag = 'internal scratch']
  #allocation2 [shape = 'f32[1]{0:T(128)S(6)}', space=smem, size = 0x200, scoped, tag = 'scoped memory for tpu_custom_call.1']
  %s0 = inlined_call_operand.<no memory space> [shape: f32[1], index: 0, kind: input, shape index: {}]
  %s1 = inlined_call_operand.hbm [shape: f32[8,256], index: 1, kind: input, shape index: {}]
  %s2 = inlined_call_operand.hbm [shape: f32[8,256], index: 2, kind: input, shape index: {}]
  %s3 = inlined_call_operand.hbm [shape: f32[8,256], index: 3, kind: output, shape index: {}]
  %s4 = sld [smem:[#allocation0]]
  $region30: #{tpu_custom_call.1} parent=0
    _
  %s6 = ssub.s32 1, %s4
  %s7 = scalar_select 0, %s6, %s4
  %8 = sst [smem:[#allocation2]] %s0
  $region1: #{tpu_custom_call.1} parent=0
    #allocation3 [shape = 'u8[8192]{0}', space=vmem, size = 0x2000, scoped, tag = 'input window, operand 1, single buffered']
    #allocation4 [shape = 's32[1]{0}', space=sflag, size = 0x4, scoped, tag = 'scoped memory for tpu_custom_call.1']
    #allocation5 [shape = 's32[1]{0}', space=sflag, size = 0x4, scoped, tag = 'scoped memory for tpu_custom_call.1']
    #allocation6 [shape = 'u8[8192]{0}', space=vmem, size = 0x2000, scoped, tag = 'input window, operand 2, single buffered']
    #allocation7 [shape = 's32[1]{0}', space=sflag, size = 0x4, scoped, tag = 'scoped memory for tpu_custom_call.1']
    #allocation8 [shape = 'u8[8192]{0}', space=vmem, size = 0x2000, scoped, tag = 'output window, operand 0, single buffered']
    %9 = vsyncpa [#allocation4], 0
    %10 = vsyncpa [#allocation7], 0
    %11 = vsyncpa [#allocation5], 0
    // Predicated region
    $region2: #{tpu_custom_call.1} parent=1 // pred_check
      _
    $region3: #{tpu_custom_call.1} parent=1 // pred_check_branch
      %13 = sbr.rel (0) target = $region5
    $region4: #{tpu_custom_call.1} parent=1 // pred_region
      _
    $region5: #{tpu_custom_call.1} parent=1 // pred_fallthru
      _
    // Predicated region
    $region6: #{tpu_custom_call.1} parent=1 // pred_check
      _
    $region7: #{tpu_custom_call.1} parent=1 // pred_check_branch
      %15 = sbr.rel (0) target = $region9
    $region8: #{tpu_custom_call.1} parent=1 // pred_region
      %s17 = ssub.s32 256, 256
      %18 = vsyncadd [#allocation4], %s17
      %s20 = sshll.u32 [#allocation3], 4
      %s21 = int_to_ptr.vmem [resolvable:$true] %s20
      %23 = dma.hbm_to_vmem [thread:$0]  %s1, 256, %s21, [#allocation4]
    $region9: #{tpu_custom_call.1} parent=1 // pred_fallthru
      _
    // Predicated region
    $region10: #{tpu_custom_call.1} parent=1 // pred_check
      _
    $region11: #{tpu_custom_call.1} parent=1 // pred_check_branch
      %25 = sbr.rel (0) target = $region13
    $region12: #{tpu_custom_call.1} parent=1 // pred_region
      %s27 = ssub.s32 256, 256
      %28 = vsyncadd [#allocation7], %s27
      %s30 = sshll.u32 [#allocation6], 4
      %s31 = int_to_ptr.vmem [resolvable:$true] %s30
      %33 = dma.hbm_to_vmem [thread:$0]  %s2, 256, %s31, [#allocation7]
    $region13: #{tpu_custom_call.1} parent=1 // pred_fallthru
      _
    // Predicated region
    $region14: #{tpu_custom_call.1} parent=1 // pred_check
      _
    $region15: #{tpu_custom_call.1} parent=1 // pred_check_branch
      %35 = sbr.rel (0) target = $region17
    $region16: #{tpu_custom_call.1} parent=1 // pred_region
      %36 = dma.done [#allocation4], 256
    $region17: #{tpu_custom_call.1} parent=1 // pred_fallthru
      _
    // Predicated region
    $region18: #{tpu_custom_call.1} parent=1 // pred_check
      _
    $region19: #{tpu_custom_call.1} parent=1 // pred_check_branch
      %38 = sbr.rel (0) target = $region21
    $region20: #{tpu_custom_call.1} parent=1 // pred_region
      %39 = dma.done [#allocation7], 256
    $region21: #{tpu_custom_call.1} parent=1 // pred_fallthru
      _
    %s40 = sld [smem:[#allocation2]]
    %v41 = vld [vmem:[#allocation3] sm:$0xff]
    %v42 = vld [vmem:[#allocation3 + $0x8] sm:$0xff]
    %v43 = vld [vmem:[#allocation6] sm:$0xff]
    %v44 = vld [vmem:[#allocation6 + $0x8] sm:$0xff]
    %v45 = vstv %s40
    %v46 = vmul.f32 %v45, %v41
    %v47 = vmul.f32 %v45, %v42
    %v48 = vadd.f32 %v46, %v43
    %v49 = vadd.f32 %v47, %v44
    %50 = vst [vmem:[#allocation8] sm:$0xff] %v48
    %51 = vst [vmem:[#allocation8 + $0x8] sm:$0xff] %v49
    // Predicated region
    $region22: #{tpu_custom_call.1} parent=1 // pred_check
      _
    $region23: #{tpu_custom_call.1} parent=1 // pred_check_branch
      %53 = sbr.rel (0) target = $region25
    $region24: #{tpu_custom_call.1} parent=1 // pred_region
      %s55 = ssub.s32 256, 256
      %56 = vsyncadd [#allocation5], %s55
      %s58 = sshll.u32 [#allocation8], 4
      %s59 = int_to_ptr.vmem [resolvable:$true] %s58
      %61 = dma.vmem_to_hbm [thread:$0]  %s59, 256, %s3, [#allocation5]
    $region25: #{tpu_custom_call.1} parent=1 // pred_fallthru
      _
    // Predicated region
    $region26: #{tpu_custom_call.1} parent=1 // pred_check
      _
    $region27: #{tpu_custom_call.1} parent=1 // pred_check_branch
      %63 = sbr.rel (0) target = $region29
    $region28: #{tpu_custom_call.1} parent=1 // pred_region
      %64 = dma.done [#allocation5], 256
    $region29: #{tpu_custom_call.1} parent=1 // pred_fallthru
      _
    %65 = vsyncpa [#allocation4], 1
    %66 = vsyncpa [#allocation7], 1
    %67 = vsyncpa [#allocation5], 1

</llo_original>
